<compile_context>
chip_gen: v7x
topology: tpu7x:2x2x1
jax: 0.10.0
libtpu: 0.0.40
codegen_flags: <defaults>
</compile_context>

<pallas_src>
import functools

import jax
import jax.numpy as jnp
from jax.experimental import pallas as pl
from jax.experimental.pallas import tpu as pltpu

EPS = 1e-5  # BatchNorm2d default eps


def _round_up(x, m):
    return ((x + m - 1) // m) * m


# ----------------------------- kernels ---------------------------------------

def _accumulate_stats(y, stats_ref, is_first):
    """Accumulate per-channel [sum; sum_sq] into a resident (2, N) VMEM accumulator."""
    @pl.when(is_first)
    def _():
        stats_ref[...] = jnp.zeros_like(stats_ref)
    # NOTE: the axis-0 reductions are VPU/XLU work with plenty of slack under the MXU matmul
    # (small K); not the binding unit at these shapes.
    s = jnp.sum(y, axis=0, keepdims=True)
    sq = jnp.sum(y * y, axis=0, keepdims=True)
    stats_ref[...] += jnp.concatenate([s, sq], axis=0)


def conv_stats_kernel(p_ref, w_ref, stats_ref):
    """Pass 1 (recompute path): conv-as-matmul, emit only batch statistics."""
    y = jnp.dot(p_ref[...], w_ref[...], preferred_element_type=jnp.float32)
    _accumulate_stats(y, stats_ref, pl.program_id(0) == 0)


def conv_stats_y_kernel(p_ref, w_ref, y_ref, stats_ref):
    """Pass 1 (fallback path, large K): conv-as-matmul, emit Y + batch statistics."""
    y = jnp.dot(p_ref[...], w_ref[...], preferred_element_type=jnp.float32)
    y_ref[...] = y
    _accumulate_stats(y, stats_ref, pl.program_id(0) == 0)


def _folded_scale_bias(stats_ref, gb_ref, total_m):
    """Fold BN into one per-channel scale/bias (3 VPU ops per output element downstream).

    Recomputed per tile: it's a (1, N) vector op + one EUP rsqrt, fully hidden under the MXU,
    and -- unlike a step-0-only init -- correct when the "parallel" grid is megacore-split.
    NOTE: E[y^2]-E[y]^2 can cancel for very large M / large channel means; clamped at 0 and
    fine at these scales (shifted sums would be the production fix).
    """
    inv_m = 1.0 / total_m
    mean = stats_ref[0:1, :] * inv_m
    var = jnp.maximum(stats_ref[1:2, :] * inv_m - mean * mean, 0.0)
    inv = jax.lax.rsqrt(var + EPS)
    scale = gb_ref[0:1, :] * inv
    bias = gb_ref[1:2, :] - mean * scale
    return scale, bias


def conv_bn_relu_kernel(p_ref, w_ref, stats_ref, gb_ref, o_ref, *, total_m):
    """Pass 2 (recompute path): redo the matmul, folded BN + ReLU, lane-dense store."""
    scale, bias = _folded_scale_bias(stats_ref, gb_ref, total_m)
    y = jnp.dot(p_ref[...], w_ref[...], preferred_element_type=jnp.float32)
    o_ref[...] = jnp.maximum(y * scale + bias, 0.0)


def bn_relu_kernel(y_ref, stats_ref, gb_ref, o_ref, *, total_m):
    """Pass 2 (fallback path): normalize a materialized Y (aliased in place) + ReLU."""
    scale, bias = _folded_scale_bias(stats_ref, gb_ref, total_m)
    o_ref[...] = jnp.maximum(y_ref[...] * scale + bias, 0.0)


# ----------------------------- wrapper ----------------------------------------

def block_forward(x, weight, gamma, beta, *, tile_m=None, compute_dtype=jnp.float32,
                  channels_last_out=False, prefer_recompute=None):
    """x: (B, Cin, H, W) NCHW f32. weight: (Cout, Cin, 4, 4). gamma/beta: (1, Cout).

    compute_dtype=jnp.bfloat16 halves P's DMA bytes and hits MXU peak on v6e/v7x, but does
    not meet the 1e-4 tolerance used in the self-test, so f32 is the default.
    """
    B, Cin, H, W = x.shape
    Cout = weight.shape[0]
    Hout, Wout = H // 2, W // 2
    M = B * Hout * Wout
    K = Cin * 16

    # Lane-dense output channel count (biggest single store-path lever).
    N = _round_up(Cout, 128)
    bpe = jnp.dtype(compute_dtype).itemsize

    # --- tile_m: largest multiple of 8 whose double-buffered working set fits the budget ---
    vmem_budget = 24 << 20
    fixed = 2 * K * N * bpe + 8 * N * 4           # Wm (double-buffer slack) + small vectors
    per_row = 2 * K * bpe + 2 * N * 4             # double-buffered P row + output/Y row
    if tile_m is None:
        tile_m = (max(vmem_budget - fixed, 8 * per_row) // per_row) // 8 * 8
        tile_m = min(max(tile_m, 8), 2048)
    tile_m = max(8, (int(tile_m) // 8) * 8)
    tile_m = min(tile_m, _round_up(M, 8))
    M_pad = _round_up(M, tile_m)
    grid_m = M_pad // tile_m

    # Explicit VMEM budget, clamped so the same choice fits v5e/v6e (128 MiB) and v7x (64 MiB).
    per_step = fixed + tile_m * per_row
    vmem_limit = int(min(max(2 * per_step, 32 << 20), 64 << 20))

    # --- wrapper glue: NCHW->NHWC once, reflect pad, strided im2col (no big permute) -------
    x_nhwc = jnp.transpose(x, (0, 2, 3, 1))                       # (B, H, W, Cin)
    xp = jnp.pad(x_nhwc, ((0, 0), (1, 1), (1, 1), (0, 0)), mode="reflect")
    cols = [xp[:, kh:kh + 2 * Hout:2, kw:kw + 2 * Wout:2, :]      # (B, Hout, Wout, Cin)
            for kh in range(4) for kw in range(4)]
    P = jnp.concatenate(cols, axis=-1).reshape(M, K)              # col = (kh*4+kw)*Cin + ci
    if M_pad != M:
        P = jnp.pad(P, ((0, M_pad - M), (0, 0)))                  # zero rows: stats-neutral

    # weight (Cout, Cin, kh, kw) -> (kh, kw, Cin, Cout) -> (K, N); pad channels with zeros.
    Wm = jnp.transpose(weight, (2, 3, 1, 0)).reshape(K, Cout)
    Wm = jnp.pad(Wm, ((0, 0), (0, N - Cout)))
    g = jnp.pad(gamma.reshape(1, Cout).astype(jnp.float32), ((0, 0), (0, N - Cout)))
    bt = jnp.pad(beta.reshape(1, Cout).astype(jnp.float32), ((0, 0), (0, N - Cout)))
    gb = jnp.concatenate([g, bt], axis=0)                         # (2, N): [gamma; beta]

    P = P.astype(compute_dtype)
    Wm = Wm.astype(compute_dtype)

    total_m = float(M)  # true row count (excludes zero padding)

    # Recompute the matmul in pass 2 iff re-reading P beats a Y HBM round trip:
    #   recompute HBM bytes  = 2*M*K*bpe + M*N*4
    #   materialize HBM bytes = M*K*bpe + 3*M*N*4     (Y write + read + in-place overwrite)
    if prefer_recompute is None:
        prefer_recompute = (K * bpe) <= (8 * N)

    if prefer_recompute:
        # ---- pass 1: conv matmul + per-channel batch statistics (no Y in HBM) ----
        stats = pl.pallas_call(
            conv_stats_kernel,
            out_shape=jax.ShapeDtypeStruct((2, N), jnp.float32),
            grid_spec=pltpu.PrefetchScalarGridSpec(
                num_scalar_prefetch=0,
                grid=(grid_m,),
                in_specs=[
                    pl.BlockSpec((tile_m, K), lambda i: (i, 0)),
                    pl.BlockSpec((K, N), lambda i: (0, 0)),
                ],
                out_specs=pl.BlockSpec((2, N), lambda i: (0, 0)),   # resident accumulator
            ),
            compiler_params=pltpu.CompilerParams(
                dimension_semantics=("arbitrary",), vmem_limit_bytes=vmem_limit),
        )(P, Wm)

        # ---- pass 2: recompute matmul, folded BN + ReLU, lane-dense store ----
        # Fully "parallel": shards across both TensorCores on v7x.
        out_flat = pl.pallas_call(
            functools.partial(conv_bn_relu_kernel, total_m=total_m),
            out_shape=jax.ShapeDtypeStruct((M_pad, N), jnp.float32),
            grid_spec=pltpu.PrefetchScalarGridSpec(
                num_scalar_prefetch=0,
                grid=(grid_m,),
                in_specs=[
                    pl.BlockSpec((tile_m, K), lambda i: (i, 0)),
                    pl.BlockSpec((K, N), lambda i: (0, 0)),
                    pl.BlockSpec((2, N), lambda i: (0, 0)),
                    pl.BlockSpec((2, N), lambda i: (0, 0)),
                ],
                out_specs=pl.BlockSpec((tile_m, N), lambda i: (i, 0)),
            ),
            compiler_params=pltpu.CompilerParams(
                dimension_semantics=("parallel",), vmem_limit_bytes=vmem_limit),
        )(P, Wm, stats, gb)
    else:
        # ---- fallback for large K: materialize Y once, normalize it in place ----
        y, stats = pl.pallas_call(
            conv_stats_y_kernel,
            out_shape=(
                jax.ShapeDtypeStruct((M_pad, N), jnp.float32),
                jax.ShapeDtypeStruct((2, N), jnp.float32),
            ),
            grid_spec=pltpu.PrefetchScalarGridSpec(
                num_scalar_prefetch=0,
                grid=(grid_m,),
                in_specs=[
                    pl.BlockSpec((tile_m, K), lambda i: (i, 0)),
                    pl.BlockSpec((K, N), lambda i: (0, 0)),
                ],
                out_specs=[
                    pl.BlockSpec((tile_m, N), lambda i: (i, 0)),
                    pl.BlockSpec((2, N), lambda i: (0, 0)),
                ],
            ),
            compiler_params=pltpu.CompilerParams(
                dimension_semantics=("arbitrary",), vmem_limit_bytes=vmem_limit),
        )(P, Wm)

        out_flat = pl.pallas_call(
            functools.partial(bn_relu_kernel, total_m=total_m),
            out_shape=jax.ShapeDtypeStruct((M_pad, N), jnp.float32),
            grid_spec=pltpu.PrefetchScalarGridSpec(
                num_scalar_prefetch=0,
                grid=(grid_m,),
                in_specs=[
                    pl.BlockSpec((tile_m, N), lambda i: (i, 0)),
                    pl.BlockSpec((2, N), lambda i: (0, 0)),
                    pl.BlockSpec((2, N), lambda i: (0, 0)),
                ],
                out_specs=pl.BlockSpec((tile_m, N), lambda i: (i, 0)),
            ),
            input_output_aliases={0: 0},   # normalize Y in place (no extra HBM allocation)
            compiler_params=pltpu.CompilerParams(
                dimension_semantics=("parallel",), vmem_limit_bytes=vmem_limit),
        )(y, stats, gb)

    out = out_flat[:M, :Cout].reshape(B, Hout, Wout, Cout)
    if channels_last_out:
        return out                      # skip the extra HBM transpose if consumer is NHWC
    return jnp.transpose(out, (0, 3, 1, 2))  # match PyTorch NCHW contract


# ----------------------------- reference & test -------------------------------

def reference(x, weight, gamma, beta):
    """Pure-JAX reference of the PyTorch forward (train-mode BN, no dropout)."""
    xp = jnp.pad(x, ((0, 0), (0, 0), (1, 1), (1, 1)), mode="reflect")
    y = jax.lax.conv_general_dilated(
        xp, weight, window_strides=(2, 2), padding="VALID",
        dimension_numbers=("NCHW", "OIHW", "NCHW"))
    mean = jnp.mean(y, axis=(0, 2, 3), keepdims=True)
    var = jnp.var(y, axis=(0, 2, 3), keepdims=True)
    yhat = (y - mean) * jax.lax.rsqrt(var + EPS)
    g = gamma.reshape(1, -1, 1, 1)
    b = beta.reshape(1, -1, 1, 1)
    return jnp.maximum(yhat * g + b, 0.0)


if __name__ == "__main__":
    key = jax.random.PRNGKey(0)
    k1, k2, k3, k4 = jax.random.split(key, 4)

    B, Cin, Cout, H, W = 2, 4, 8, 16, 16
    x = jax.random.normal(k1, (B, Cin, H, W), dtype=jnp.float32)
    weight = 0.1 * jax.random.normal(k2, (Cout, Cin, 4, 4), dtype=jnp.float32)
    gamma = 1.0 + 0.1 * jax.random.normal(k3, (1, Cout), dtype=jnp.float32)
    beta = 0.1 * jax.random.normal(k4, (1, Cout), dtype=jnp.float32)

    ref = reference(x, weight, gamma, beta)

    # default: auto tile_m, recompute path
    out = jax.block_until_ready(block_forward(x, weight, gamma, beta))
    assert out.shape == (B, Cout, H // 2, W // 2), out.shape
    assert jnp.allclose(out, ref, atol=1e-4, rtol=1e-4), float(jnp.max(jnp.abs(out - ref)))

    # non-divisible M path (M=128, tile_m=48 -> zero-padded to 144 rows, 3-step grid)
    out2 = jax.block_until_ready(block_forward(x, weight, gamma, beta, tile_m=48))
    assert jnp.allclose(out2, ref, atol=1e-4, rtol=1e-4), float(jnp.max(jnp.abs(out2 - ref)))

    # materialize-Y fallback path (input_output_aliases, in-place BN+ReLU)
    out3 = jax.block_until_ready(
        block_forward(x, weight, gamma, beta, prefer_recompute=False))
    assert jnp.allclose(out3, ref, atol=1e-4, rtol=1e-4), float(jnp.max(jnp.abs(out3 - ref)))

    # TODO(synk): nn.Dropout path (use_dropout=True) and ConvTranspose2d branch (down=False)
    # are not exercised; the default PyTorch forward skips both.
    print("KERNEL_OK")
</pallas_src>

<mosaic_0001>
module attributes {stable_mosaic.version = 11 : i64} {
  func.func @conv_stats_kernel(%arg0: i32, %arg1: memref<128x64xf32, #tpu.memory_space<vmem>>, %arg2: memref<64x128xf32, #tpu.memory_space<vmem>>, %arg3: memref<2x128xf32, #tpu.memory_space<vmem>>) attributes {dimension_semantics = [#tpu.dimension_semantics<arbitrary>], iteration_bounds = array<i64: 1>, scalar_prefetch = 0 : i64, scratch_operands = 0 : i64, tpu.core_type = #tpu.core_type<tc>, window_params = [{transform_indices = @transform_0, window_bounds = array<i64: 128, 64>}, {pipeline_mode = #tpu.pipeline_mode<synchronous>, transform_indices = @transform_1, window_bounds = array<i64: 64, 128>}, {pipeline_mode = #tpu.pipeline_mode<synchronous>, transform_indices = @transform_2, window_bounds = array<i64: 2, 128>}]} {
    %c0 = arith.constant 0 : index
    %c0_0 = arith.constant 0 : index
    %0 = vector.load %arg1[%c0, %c0_0] : memref<128x64xf32, #tpu.memory_space<vmem>>, vector<128x64xf32>
    %c0_1 = arith.constant 0 : index
    %c0_2 = arith.constant 0 : index
    %1 = vector.load %arg2[%c0_1, %c0_2] : memref<64x128xf32, #tpu.memory_space<vmem>>, vector<64x128xf32>
    %cst = arith.constant dense<0.000000e+00> : vector<128x128xf32>
    %2 = tpu.matmul %0, %1, %cst {dimension_numbers = #tpu.dot_dimension_numbers<[1], [0], [0], [1], [0, 0, 1, 1], [], []>} : vector<128x64xf32>, vector<64x128xf32>, vector<128x128xf32> -> vector<128x128xf32>
    %c0_i32 = arith.constant 0 : i32
    %3 = arith.cmpi eq, %arg0, %c0_i32 : i32
    %4 = arith.extui %3 : i1 to i32
    %c0_i32_3 = arith.constant 0 : i32
    %5 = arith.cmpi ne, %4, %c0_i32_3 : i32
    scf.if %5 {
      %cst_10 = arith.constant 0.000000e+00 : f32
      %15 = vector.broadcast %cst_10 : f32 to vector<2x128xf32>
      %c0_11 = arith.constant 0 : index
      %c0_12 = arith.constant 0 : index
      %16 = vector.load %arg3[%c0_11, %c0_12] : memref<2x128xf32, #tpu.memory_space<vmem>>, vector<2x128xf32>
      tpu.vector_store %arg3[%c0_11, %c0_12], %15 {strides = array<i32>} : memref<2x128xf32, #tpu.memory_space<vmem>>, vector<2x128xf32>,
    } else {
    }
    %cst_4 = arith.constant dense<0.000000e+00> : vector<128xf32>
    %6 = vector.multi_reduction <add>, %2, %cst_4 [0] : vector<128x128xf32> to vector<128xf32>
    %7 = vector.shape_cast %6 : vector<128xf32> to vector<1x128xf32>
    %8 = arith.mulf %2, %2 : vector<128x128xf32>
    %cst_5 = arith.constant dense<0.000000e+00> : vector<128xf32>
    %9 = vector.multi_reduction <add>, %8, %cst_5 [0] : vector<128x128xf32> to vector<128xf32>
    %10 = vector.shape_cast %9 : vector<128xf32> to vector<1x128xf32>
    %c0_6 = arith.constant 0 : index
    %c0_7 = arith.constant 0 : index
    %11 = vector.load %arg3[%c0_6, %c0_7] : memref<2x128xf32, #tpu.memory_space<vmem>>, vector<2x128xf32>
    %12 = tpu.concatenate %7, %10 in 0 : vector<1x128xf32>, vector<1x128xf32> -> vector<2x128xf32>
    %13 = arith.addf %11, %12 : vector<2x128xf32>
    %c0_8 = arith.constant 0 : index
    %c0_9 = arith.constant 0 : index
    %14 = vector.load %arg3[%c0_8, %c0_9] : memref<2x128xf32, #tpu.memory_space<vmem>>, vector<2x128xf32>
    tpu.vector_store %arg3[%c0_8, %c0_9], %13 {strides = array<i32>} : memref<2x128xf32, #tpu.memory_space<vmem>>, vector<2x128xf32>,
    return
  }
  func.func @transform_0(%arg0: i32) -> (i32, i32) {
    %c0_i32 = arith.constant 0 : i32
    %c0_i32_0 = arith.constant 0 : i32
    return %arg0, %c0_i32 : i32, i32
  }
  func.func @transform_1(%arg0: i32) -> (i32, i32) {
    %c0_i32 = arith.constant 0 : i32
    %c0_i32_0 = arith.constant 0 : i32
    %c0_i32_1 = arith.constant 0 : i32
    return %c0_i32, %c0_i32_0 : i32, i32
  }
  func.func @transform_2(%arg0: i32) -> (i32, i32) {
    %c0_i32 = arith.constant 0 : i32
    %c0_i32_0 = arith.constant 0 : i32
    %c0_i32_1 = arith.constant 0 : i32
    return %c0_i32, %c0_i32_0 : i32, i32
  }
}

</mosaic_0001>

<llo_original>
// kernel: tpu_custom_call.1
$region0: #{tpu_custom_call.1}
  #allocation0 [shape = 'u32[]', space=smem, size = 0x4, offset = 0x4, fixed_abs, tag = 'smem constant byte address 0x4 - core index']
  #allocation1 [shape = 'u32[144,128]{1,0:T(1,128)}', space=vmem, size = 0x12000, scoped, tag = 'internal scratch']
  %s0 = inlined_call_operand.vmem [shape: f32[128,64], index: 0, kind: input, shape index: {}]
  %s1 = inlined_call_operand.vmem [shape: f32[64,128], index: 1, kind: input, shape index: {}]
  %s2 = inlined_call_operand.hbm [shape: f32[2,128], index: 2, kind: output, shape index: {}]
  %s3 = sld [smem:[#allocation0]]
  $region22: #{tpu_custom_call.1} parent=0
    _
  %s5 = ssub.s32 1, %s3
  %s6 = scalar_select 0, %s5, %s3
  $region1: #{tpu_custom_call.1} parent=0
    #allocation2 [shape = 'u8[1024]{0}', space=vmem, size = 0x400, scoped, tag = 'output window, operand 0, single buffered']
    #allocation3 [shape = 's32[1]{0}', space=sflag, size = 0x4, scoped, tag = 'scoped memory for tpu_custom_call.1']
    %7 = vsyncpa [#allocation3], 0
    // Predicated region
    $region2: #{tpu_custom_call.1} parent=1 // pred_check
      _
    $region3: #{tpu_custom_call.1} parent=1 // pred_check_branch
      %9 = sbr.rel (0) target = $region5
    $region4: #{tpu_custom_call.1} parent=1 // pred_region
      _
    $region5: #{tpu_custom_call.1} parent=1 // pred_fallthru
      _
    // Predicated region
    $region6: #{tpu_custom_call.1} parent=1 // pred_check
      _
    $region7: #{tpu_custom_call.1} parent=1 // pred_check_branch
      %11 = sbr.rel (0) target = $region9
    $region8: #{tpu_custom_call.1} parent=1 // pred_region
      _
    $region9: #{tpu_custom_call.1} parent=1 // pred_fallthru
      _
    %v12 = vld [vmem:[%s0] sm:$0xff]
    %v13 = vld [vmem:[%s0 + $0x8] sm:$0xff]
    %v14 = vld [vmem:[%s0 + $0x10] sm:$0xff]
    %v15 = vld [vmem:[%s0 + $0x18] sm:$0xff]
    %v16 = vld [vmem:[%s0 + $0x20] sm:$0xff]
    %v17 = vld [vmem:[%s0 + $0x28] sm:$0xff]
    %v18 = vld [vmem:[%s0 + $0x30] sm:$0xff]
    %v19 = vld [vmem:[%s0 + $0x38] sm:$0xff]
    %v20 = vld [vmem:[%s0 + $0x40] sm:$0xff]
    %v21 = vld [vmem:[%s0 + $0x48] sm:$0xff]
    %v22 = vld [vmem:[%s0 + $0x50] sm:$0xff]
    %v23 = vld [vmem:[%s0 + $0x58] sm:$0xff]
    %v24 = vld [vmem:[%s0 + $0x60] sm:$0xff]
    %v25 = vld [vmem:[%s0 + $0x68] sm:$0xff]
    %v26 = vld [vmem:[%s0 + $0x70] sm:$0xff]
    %v27 = vld [vmem:[%s0 + $0x78] sm:$0xff]
    %v28 = vld [vmem:[%s1] sm:$0xff]
    %v29 = vld [vmem:[%s1 + $0x8] sm:$0xff]
    %v30 = vld [vmem:[%s1 + $0x10] sm:$0xff]
    %v31 = vld [vmem:[%s1 + $0x18] sm:$0xff]
    %v32 = vld [vmem:[%s1 + $0x20] sm:$0xff]
    %v33 = vld [vmem:[%s1 + $0x28] sm:$0xff]
    %v34 = vld [vmem:[%s1 + $0x30] sm:$0xff]
    %v35 = vld [vmem:[%s1 + $0x38] sm:$0xff]
    %vm36 = vcmask 523264
    %v38 = vsel %vm36, %v12, 0
    %v41 = vsel %vm36, %v13, 0
    %v44 = vsel %vm36, %v14, 0
    %v47 = vsel %vm36, %v15, 0
    %v50 = vsel %vm36, %v16, 0
    %v53 = vsel %vm36, %v17, 0
    %v56 = vsel %vm36, %v18, 0
    %v59 = vsel %vm36, %v19, 0
    %v62 = vsel %vm36, %v20, 0
    %v65 = vsel %vm36, %v21, 0
    %v68 = vsel %vm36, %v22, 0
    %v71 = vsel %vm36, %v23, 0
    %v74 = vsel %vm36, %v24, 0
    %v77 = vsel %vm36, %v25, 0
    %v80 = vsel %vm36, %v26, 0
    %v83 = vsel %vm36, %v27, 0
    %85 = vmatprep.subr.mxu0 0.0
    %86 = vmatpush1.msra.mxu0 %v28
    %87 = vmatprep.subr.mxu0 0.0
    %88 = vmatpush1.msra.mxu0 %v29
    %89 = vmatprep.subr.mxu0 0.0
    %90 = vmatpush1.msra.mxu0 %v30
    %91 = vmatprep.subr.mxu0 0.0
    %92 = vmatpush1.msra.mxu0 %v31
    %93 = vmatprep.subr.mxu0 0.0
    %94 = vmatpush1.msra.mxu0 %v32
    %95 = vmatprep.subr.mxu0 0.0
    %96 = vmatpush1.msra.mxu0 %v33
    %97 = vmatprep.subr.mxu0 0.0
    %98 = vmatpush1.msra.mxu0 %v34
    %99 = vmatprep.subr.mxu0 0.0
    %100 = vmatpush1.msra.mxu0 %v35
    %101 = vmatprep.subr.mxu0 0.0
    %102 = vmatpush1.msra.mxu0 0.0
    %103 = vmatprep.subr.mxu0 0.0
    %104 = vmatpush1.msra.mxu0 0.0
    %105 = vmatprep.subr.mxu0 0.0
    %106 = vmatpush1.msra.mxu0 0.0
    %107 = vmatprep.subr.mxu0 0.0
    %108 = vmatpush1.msra.mxu0 0.0
    %109 = vmatprep.subr.mxu0 0.0
    %110 = vmatpush1.msra.mxu0 0.0
    %111 = vmatprep.subr.mxu0 0.0
    %112 = vmatpush1.msra.mxu0 0.0
    %113 = vmatprep.subr.mxu0 0.0
    %114 = vmatpush1.msra.mxu0 0.0
    %115 = vmatprep.subr.mxu0 0.0
    %116 = vmatpush1.msra.mxu0 0.0
    %117 = vmatprep.subr.mxu0 0.0
    %118 = vmatpush1.msra.mxu0 0.0
    %119 = vmatprep.subr.mxu0 0.0
    %120 = vmatpush1.msra.mxu0 0.0
    %121 = vmatprep.subr.mxu0 0.0
    %122 = vmatpush1.msra.mxu0 0.0
    %123 = vmatprep.subr.mxu0 0.0
    %124 = vmatpush1.msra.mxu0 0.0
    %125 = vmatprep.subr.mxu0 0.0
    %126 = vmatpush1.msra.mxu0 0.0
    %127 = vmatprep.subr.mxu0 0.0
    %128 = vmatpush1.msra.mxu0 0.0
    %129 = vmatprep.subr.mxu0 0.0
    %130 = vmatpush1.msra.mxu0 0.0
    %131 = vmatprep.subr.mxu0 0.0
    %132 = vmatpush1.msra.mxu0 0.0
    %133 = vmatprep.subr.mxu0 0.0
    %134 = vmatpush1.msra.mxu0 0.0
    %135 = vmatprep.subr.mxu0 0.0
    %136 = vmatpush1.msra.mxu0 0.0
    %137 = vmatprep.subr.mxu0 0.0
    %138 = vmatpush1.msra.mxu0 0.0
    %139 = vmatprep.subr.mxu0 0.0
    %140 = vmatpush1.msra.mxu0 0.0
    %141 = vmatprep.subr.mxu0 0.0
    %142 = vmatpush1.msra.mxu0 0.0
    %143 = vmatprep.subr.mxu0 0.0
    %144 = vmatpush1.msra.mxu0 0.0
    %145 = vmatprep.subr.mxu0 0.0
    %146 = vmatpush1.msra.mxu0 0.0
    %147 = vmatprep.subr.mxu0 0.0
    %148 = vmatpush1.msra.mxu0 0.0
    %149 = vmatprep.mubr.f32.mxu0 0.0
    %150 = vmatmul.mubr.f32.gmra.mrb[0].mxu0 %v38
    %v151 = vpop.f32.mrb[0].mxu0
    %v152 = vadd.f32 0.0, %v151
    %v153 = vpop.f32.mrb[0].mxu0
    %154 = vmatprep.mubr.f32.mxu0 0.0
    %155 = vmatmul.mubr.f32.gmra.mrb[0].mxu0 %v41
    %v156 = vpop.f32.mrb[0].mxu0
    %v157 = vadd.f32 0.0, %v156
    %v158 = vpop.f32.mrb[0].mxu0
    %159 = vmatprep.mubr.f32.mxu0 0.0
    %160 = vmatmul.mubr.f32.gmra.mrb[0].mxu0 %v44
    %v161 = vpop.f32.mrb[0].mxu0
    %v162 = vadd.f32 0.0, %v161
    %v163 = vpop.f32.mrb[0].mxu0
    %164 = vmatprep.mubr.f32.mxu0 0.0
    %165 = vmatmul.mubr.f32.gmra.mrb[0].mxu0 %v47
    %v166 = vpop.f32.mrb[0].mxu0
    %v167 = vadd.f32 0.0, %v166
    %v168 = vpop.f32.mrb[0].mxu0
    %169 = vmatprep.mubr.f32.mxu0 0.0
    %170 = vmatmul.mubr.f32.gmra.mrb[0].mxu0 %v50
    %v171 = vpop.f32.mrb[0].mxu0
    %v172 = vadd.f32 0.0, %v171
    %v173 = vpop.f32.mrb[0].mxu0
    %174 = vmatprep.mubr.f32.mxu0 0.0
    %175 = vmatmul.mubr.f32.gmra.mrb[0].mxu0 %v53
    %v176 = vpop.f32.mrb[0].mxu0
    %v177 = vadd.f32 0.0, %v176
    %v178 = vpop.f32.mrb[0].mxu0
    %179 = vmatprep.mubr.f32.mxu0 0.0
    %180 = vmatmul.mubr.f32.gmra.mrb[0].mxu0 %v56
    %v181 = vpop.f32.mrb[0].mxu0
    %v182 = vadd.f32 0.0, %v181
    %v183 = vpop.f32.mrb[0].mxu0
    %184 = vmatprep.mubr.f32.mxu0 0.0
    %185 = vmatmul.mubr.f32.gmra.mrb[0].mxu0 %v59
    %v186 = vpop.f32.mrb[0].mxu0
    %v187 = vadd.f32 0.0, %v186
    %v188 = vpop.f32.mrb[0].mxu0
    %189 = vmatprep.mubr.f32.mxu0 0.0
    %190 = vmatmul.mubr.f32.gmra.mrb[0].mxu0 %v62
    %v191 = vpop.f32.mrb[0].mxu0
    %v192 = vadd.f32 0.0, %v191
    %v193 = vpop.f32.mrb[0].mxu0
    %194 = vmatprep.mubr.f32.mxu0 0.0
    %195 = vmatmul.mubr.f32.gmra.mrb[0].mxu0 %v65
    %v196 = vpop.f32.mrb[0].mxu0
    %v197 = vadd.f32 0.0, %v196
    %v198 = vpop.f32.mrb[0].mxu0
    %199 = vmatprep.mubr.f32.mxu0 0.0
    %200 = vmatmul.mubr.f32.gmra.mrb[0].mxu0 %v68
    %v201 = vpop.f32.mrb[0].mxu0
    %v202 = vadd.f32 0.0, %v201
    %v203 = vpop.f32.mrb[0].mxu0
    %204 = vmatprep.mubr.f32.mxu0 0.0
    %205 = vmatmul.mubr.f32.gmra.mrb[0].mxu0 %v71
    %v206 = vpop.f32.mrb[0].mxu0
    %v207 = vadd.f32 0.0, %v206
    %v208 = vpop.f32.mrb[0].mxu0
    %209 = vmatprep.mubr.f32.mxu0 0.0
    %210 = vmatmul.mubr.f32.gmra.mrb[0].mxu0 %v74
    %v211 = vpop.f32.mrb[0].mxu0
    %v212 = vadd.f32 0.0, %v211
    %v213 = vpop.f32.mrb[0].mxu0
    %214 = vmatprep.mubr.f32.mxu0 0.0
    %215 = vmatmul.mubr.f32.gmra.mrb[0].mxu0 %v77
    %v216 = vpop.f32.mrb[0].mxu0
    %v217 = vadd.f32 0.0, %v216
    %v218 = vpop.f32.mrb[0].mxu0
    %219 = vmatprep.mubr.f32.mxu0 0.0
    %220 = vmatmul.mubr.f32.gmra.mrb[0].mxu0 %v80
    %v221 = vpop.f32.mrb[0].mxu0
    %v222 = vadd.f32 0.0, %v221
    %v223 = vpop.f32.mrb[0].mxu0
    %224 = vmatprep.mubr.f32.mxu0 0.0
    %225 = vmatmul.mubr.f32.gmra.mrb[0].mxu0 %v83
    %v226 = vpop.f32.mrb[0].mxu0
    %v227 = vadd.f32 0.0, %v226
    %v228 = vpop.f32.mrb[0].mxu0
    %229 = vdwg.mxu0
    %p230 = scmp.eq.s32.totalorder 0, 0
    // Predicated region
    $region10: #{tpu_custom_call.1} parent=1 // pred_check
      %p231 = pneg %p230
    $region11: #{tpu_custom_call.1} parent=1 // pred_check_branch
      %233 = sbr.rel (%p231) target = $region13
    $region12: #{tpu_custom_call.1} parent=1 // pred_region
      %234 = vst [vmem:[#allocation2] sm:$0x3] 0.0
    $region13: #{tpu_custom_call.1} parent=1 // pred_fallthru
      _
    %v235 = vadd.f32 %v152, %v157
    %v236 = vadd.f32 %v235, %v162
    %v237 = vadd.f32 %v236, %v167
    %v238 = vadd.f32 %v237, %v172
    %v239 = vadd.f32 %v238, %v177
    %v240 = vadd.f32 %v239, %v182
    %v241 = vadd.f32 %v240, %v187
    %v242 = vadd.f32 %v241, %v192
    %v243 = vadd.f32 %v242, %v197
    %v244 = vadd.f32 %v243, %v202
    %v245 = vadd.f32 %v244, %v207
    %v246 = vadd.f32 %v245, %v212
    %v247 = vadd.f32 %v246, %v217
    %v248 = vadd.f32 %v247, %v222
    %v249 = vadd.f32 %v248, %v227
    %v250 = vrot.slane %v249, 4
    %v251 = vadd.f32 %v249, %v250
    %v252 = vrot.slane %v251, 2
    %v253 = vadd.f32 %v251, %v252
    %v254 = vrot.slane %v253, 1
    %v255 = vadd.f32 %v253, %v254
    %v256 = vmul.f32 %v152, %v152
    %v257 = vmul.f32 %v157, %v157
    %v258 = vmul.f32 %v162, %v162
    %v259 = vmul.f32 %v167, %v167
    %v260 = vmul.f32 %v172, %v172
    %v261 = vmul.f32 %v177, %v177
    %v262 = vmul.f32 %v182, %v182
    %v263 = vmul.f32 %v187, %v187
    %v264 = vmul.f32 %v192, %v192
    %v265 = vmul.f32 %v197, %v197
    %v266 = vmul.f32 %v202, %v202
    %v267 = vmul.f32 %v207, %v207
    %v268 = vmul.f32 %v212, %v212
    %v269 = vmul.f32 %v217, %v217
    %v270 = vmul.f32 %v222, %v222
    %v271 = vmul.f32 %v227, %v227
    %v272 = vadd.f32 %v256, %v257
    %v273 = vadd.f32 %v272, %v258
    %v274 = vadd.f32 %v273, %v259
    %v275 = vadd.f32 %v274, %v260
    %v276 = vadd.f32 %v275, %v261
    %v277 = vadd.f32 %v276, %v262
    %v278 = vadd.f32 %v277, %v263
    %v279 = vadd.f32 %v278, %v264
    %v280 = vadd.f32 %v279, %v265
    %v281 = vadd.f32 %v280, %v266
    %v282 = vadd.f32 %v281, %v267
    %v283 = vadd.f32 %v282, %v268
    %v284 = vadd.f32 %v283, %v269
    %v285 = vadd.f32 %v284, %v270
    %v286 = vadd.f32 %v285, %v271
    %v287 = vrot.slane %v286, 4
    %v288 = vadd.f32 %v286, %v287
    %v289 = vrot.slane %v288, 2
    %v290 = vadd.f32 %v288, %v289
    %v291 = vrot.slane %v290, 1
    %v292 = vadd.f32 %v290, %v291
    %v293 = vld [vmem:[#allocation2] sm:$0x3]
    %vm294 = vcmask 1040384
    %v295 = vsel %vm294, %v255, %v292
    %v296 = vadd.f32 %v293, %v295
    %297 = vst [vmem:[#allocation2] sm:$0x3] %v296
    // Predicated region
    $region14: #{tpu_custom_call.1} parent=1 // pred_check
      _
    $region15: #{tpu_custom_call.1} parent=1 // pred_check_branch
      %299 = sbr.rel (0) target = $region17
    $region16: #{tpu_custom_call.1} parent=1 // pred_region
      %s301 = ssub.s32 32, 32
      %302 = vsyncadd [#allocation3], %s301
      %s304 = sshll.u32 [#allocation2], 4
      %s305 = int_to_ptr.vmem [resolvable:$true] %s304
      %307 = dma.vmem_to_hbm [thread:$0]  %s305, 32, %s2, [#allocation3]
    $region17: #{tpu_custom_call.1} parent=1 // pred_fallthru
      _
    // Predicated region
    $region18: #{tpu_custom_call.1} parent=1 // pred_check
      _
    $region19: #{tpu_custom_call.1} parent=1 // pred_check_branch
      %309 = sbr.rel (0) target = $region21
    $region20: #{tpu_custom_call.1} parent=1 // pred_region
      %310 = dma.done [#allocation3], 32
    $region21: #{tpu_custom_call.1} parent=1 // pred_fallthru
      _
    %311 = vsyncpa [#allocation3], 1

</llo_original>
